<compile_context>
chip_gen: v7x
topology: tpu7x:2x2x1
jax: 0.10.0
libtpu: 0.0.40
codegen_flags: <defaults>
</compile_context>

<pallas_src>
import functools

import jax
import jax.numpy as jnp
import numpy as np
from jax.experimental import pallas as pl
from jax.experimental.pallas import tpu as pltpu

_LOG2 = float(np.log(2.0))


def _bce_masked_kernel(x_ref, t_ref, len_ref, out_ref, *, block_t, pos_weight):
    """Partial masked BCE-with-logits sum for one (block_b, block_t) tile."""
    j = pl.program_id(1)

    x = x_ref[...].astype(jnp.float32)          # (block_b, block_t) logits
    y = t_ref[...].astype(jnp.float32)          # (block_b, block_t) targets
    lengths = len_ref[...]                      # (block_b, 1) int32

    # sequence mask: lane-only iota broadcast against per-row lengths.
    # Handles both T-overrun (length <= T) and B-overrun (padded length == 0).
    t_ids = jax.lax.broadcasted_iota(jnp.int32, (1, block_t), 1) + j * block_t
    valid = t_ids < lengths                     # (block_b, block_t) bool

    # Numerically stable BCE-with-logits (general soft-target formula, same as
    # torch):  l = (1 - y) * x + (1 + (p - 1) * y) * softplus(-x)
    softplus_neg_x = jnp.maximum(-x, 0.0) + jnp.log1p(jnp.exp(-jnp.abs(x)))
    w = 1.0 + (jnp.float32(pos_weight) - 1.0) * y
    bce = (1.0 - y) * x + w * softplus_neg_x

    # Select (not multiply) so garbage/NaN in OOB boundary regions is dropped.
    out_ref[0, 0] = jnp.sum(jnp.where(valid, bce, 0.0))


def _cdiv(a, b):
    return -(-a // b)


def _round_up(v, m):
    return _cdiv(v, m) * m


def _maybe_split_for_megacore(B, T, block_b, block_t):
    """Ensure >= 2 grid steps so both v7x TensorCores get work."""
    if _cdiv(B, block_b) * _cdiv(T, block_t) >= 2:
        return block_b, block_t
    if B >= 16:
        return min(_round_up(_cdiv(B, 2), 8), (B // 8) * 8), block_t
    if T >= 256:
        return block_b, min(_round_up(_cdiv(T, 2), 128), (T // 128) * 128)
    return block_b, block_t          # tiny problem: not worth splitting


def bce_loss_masked(x, target, length, *, pos_weight=1.0):
    """Pallas implementation of BCELossMasked.forward (scalar pos_weight)."""
    pw = np.asarray(pos_weight, dtype=np.float64)
    if pw.size != 1:
        # TODO(synk): per-class pos_weight vector (supported by torch) not implemented.
        raise NotImplementedError("per-class pos_weight vectors are not supported")
    pos_weight = float(pw.reshape(()))

    B, T = x.shape
    length = jnp.minimum(length.astype(jnp.int32), T)

    # ---- lane-dense, VMEM-budgeted tiling (no divisibility requirement) ----
    max_block_elems = 1024 * 1024                  # ~4 MiB f32 per input tile
    if T >= 128:
        block_t = min(4096, (T // 128) * 128)      # multiple of 128, <= T
    else:
        block_t = T                                # full (sub-128) lane dim
    if B >= 8:
        rows_budget = max(8, (max_block_elems // block_t) // 8 * 8)
        block_b = min(rows_budget, (B // 8) * 8)   # multiple of 8, <= B
    else:
        block_b = B                                # full (sub-8) sublane dim

    block_b, block_t = _maybe_split_for_megacore(B, T, block_b, block_t)
    grid = (_cdiv(B, block_b), _cdiv(T, block_t))

    # `length` must never be read OOB (a garbage length could un-mask garbage
    # rows), so pad it (tiny) with zeros to exactly grid[0] * block_b rows.
    len_rows = grid[0] * block_b
    len_p = jnp.pad(length, (0, len_rows - B)).reshape(len_rows, 1)

    kernel = functools.partial(
        _bce_masked_kernel, block_t=block_t, pos_weight=pos_weight)

    elems = B * T
    cost = pl.CostEstimate(
        flops=10 * elems,
        transcendentals=2 * elems,
        bytes_accessed=elems * (x.dtype.itemsize + target.dtype.itemsize)
        + len_rows * 4 + grid[0] * grid[1] * 4,
    )

    tile_bytes = block_b * block_t * (x.dtype.itemsize + target.dtype.itemsize)
    vmem_limit = int(min(48 * 1024 * 1024, max(32 * 1024 * 1024, 4 * tile_bytes)))

    partials = pl.pallas_call(
        kernel,
        out_shape=jax.ShapeDtypeStruct(grid, jnp.float32),
        grid=grid,
        in_specs=[
            pl.BlockSpec((block_b, block_t), lambda i, j: (i, j)),
            pl.BlockSpec((block_b, block_t), lambda i, j: (i, j)),
            pl.BlockSpec((block_b, 1), lambda i, j: (i, 0)),
        ],
        out_specs=pl.BlockSpec((1, 1), lambda i, j: (i, j),
                               memory_space=pltpu.MemorySpace.SMEM),
        compiler_params=pltpu.CompilerParams(
            dimension_semantics=("parallel", "parallel"),
            vmem_limit_bytes=vmem_limit,
        ),
        cost_estimate=cost,
    )(x, target, len_p)

    # Tiny final combine in plain JAX (keeps the grid fully parallel).
    # Masked (real) positions have both logits and targets zeroed by the
    # module, so each contributes softplus(0) = log(2) to the summed loss.
    mask_sum = jnp.sum(length.astype(jnp.float32))
    total = jnp.sum(partials) + _LOG2 * (jnp.float32(B * T) - mask_sum)
    return total / mask_sum      # NaN if all lengths are 0, matching torch


def bce_loss_masked_ref(x, target, length, *, pos_weight=1.0):
    """Pure-JAX reference mirroring the PyTorch module."""
    B, T = x.shape
    mask = (jnp.arange(T)[None, :] < length[:, None]).astype(jnp.float32)
    z = x.astype(jnp.float32) * mask
    y = target.astype(jnp.float32) * mask
    softplus_neg_z = jnp.maximum(-z, 0.0) + jnp.log1p(jnp.exp(-jnp.abs(z)))
    w = 1.0 + (pos_weight - 1.0) * y
    loss = jnp.sum((1.0 - y) * z + w * softplus_neg_z)
    return loss / jnp.sum(mask)


if __name__ == "__main__":
    key = jax.random.PRNGKey(0)
    kx, kt, kx2, kt2 = jax.random.split(key, 4)

    # Case 1: small, single-tile (block == full dims).
    B, T = 4, 96
    pos_weight = 5.0
    x = jax.random.normal(kx, (B, T), dtype=jnp.float32)
    target = (jax.random.uniform(kt, (B, T)) > 0.5).astype(jnp.float32)
    length = jnp.array([32, 96, 50, 7], dtype=jnp.int32)

    got = jax.block_until_ready(
        bce_loss_masked(x, target, length, pos_weight=pos_weight))
    want = jax.block_until_ready(
        bce_loss_masked_ref(x, target, length, pos_weight=pos_weight))
    assert np.allclose(np.asarray(got), np.asarray(want),
                       rtol=1e-5, atol=1e-5), (got, want)

    # Case 2: non-aligned shape exercising cdiv grid + OOB boundary masking.
    B2, T2 = 20, 300
    x2 = jax.random.normal(kx2, (B2, T2), dtype=jnp.float32)
    target2 = (jax.random.uniform(kt2, (B2, T2)) > 0.5).astype(jnp.float32)
    length2 = (jax.random.uniform(kt, (B2,)) * (T2 + 1)).astype(jnp.int32)

    got2 = jax.block_until_ready(
        bce_loss_masked(x2, target2, length2, pos_weight=2.0))
    want2 = jax.block_until_ready(
        bce_loss_masked_ref(x2, target2, length2, pos_weight=2.0))
    assert np.allclose(np.asarray(got2), np.asarray(want2),
                       rtol=1e-5, atol=1e-5), (got2, want2)

    print("KERNEL_OK")
</pallas_src>

<mosaic_0001>
module attributes {stable_mosaic.version = 11 : i64} {
  func.func @_bce_masked_kernel(%arg0: i32, %arg1: i32, %arg2: memref<4x96xf32, #tpu.memory_space<vmem>>, %arg3: memref<4x96xf32, #tpu.memory_space<vmem>>, %arg4: memref<4x1xi32, #tpu.memory_space<vmem>>, %arg5: memref<1x1xf32, #tpu.memory_space<smem>>) attributes {dimension_semantics = [#tpu.dimension_semantics<parallel>, #tpu.dimension_semantics<parallel>], iteration_bounds = array<i64: 1, 1>, scalar_prefetch = 0 : i64, scratch_operands = 0 : i64, tpu.core_type = #tpu.core_type<tc>, window_params = [{transform_indices = @transform_0, window_bounds = array<i64: 4, 96>}, {transform_indices = @transform_1, window_bounds = array<i64: 4, 96>}, {transform_indices = @transform_2, window_bounds = array<i64: 4, 1>}, {transform_indices = @transform_3, window_bounds = array<i64: 1, 1>}]} {
    %c0 = arith.constant 0 : index
    %c0_0 = arith.constant 0 : index
    %0 = vector.load %arg2[%c0, %c0_0] : memref<4x96xf32, #tpu.memory_space<vmem>>, vector<4x96xf32>
    %c0_1 = arith.constant 0 : index
    %c0_2 = arith.constant 0 : index
    %1 = vector.load %arg3[%c0_1, %c0_2] : memref<4x96xf32, #tpu.memory_space<vmem>>, vector<4x96xf32>
    %c0_3 = arith.constant 0 : index
    %c0_4 = arith.constant 0 : index
    %2 = vector.load %arg4[%c0_3, %c0_4] : memref<4x1xi32, #tpu.memory_space<vmem>>, vector<4x1xi32>
    %3 = tpu.iota {dimensions = array<i32: 1>} : vector<1x96xi32>
    %c96_i32 = arith.constant 96 : i32
    %4 = arith.muli %arg1, %c96_i32 : i32
    %5 = vector.broadcast %4 : i32 to vector<1x96xi32>
    %6 = arith.addi %3, %5 : vector<1x96xi32>
    %7 = vector.broadcast %6 : vector<1x96xi32> to vector<4x96xi32>
    %8 = vector.broadcast %2 : vector<4x1xi32> to vector<4x96xi32>
    %9 = arith.cmpi slt, %7, %8 : vector<4x96xi32>
    %cst = arith.constant 0.000000e+00 : f32
    %10 = vector.broadcast %cst : f32 to vector<4x96xf32>
    %11 = arith.subf %10, %0 : vector<4x96xf32>
    %cst_5 = arith.constant 0.000000e+00 : f32
    %12 = vector.broadcast %cst_5 : f32 to vector<4x96xf32>
    %13 = arith.maximumf %11, %12 : vector<4x96xf32>
    %14 = math.absf %0 : vector<4x96xf32>
    %cst_6 = arith.constant 0.000000e+00 : f32
    %15 = vector.broadcast %cst_6 : f32 to vector<4x96xf32>
    %16 = arith.subf %15, %14 : vector<4x96xf32>
    %17 = math.exp %16 : vector<4x96xf32>
    %18 = math.log1p %17 : vector<4x96xf32>
    %19 = arith.addf %13, %18 : vector<4x96xf32>
    %cst_7 = arith.constant 5.000000e+00 : f32
    %cst_8 = arith.constant 1.000000e+00 : f32
    %20 = arith.subf %cst_7, %cst_8 : f32
    %21 = vector.broadcast %20 : f32 to vector<4x96xf32>
    %22 = arith.mulf %21, %1 : vector<4x96xf32>
    %cst_9 = arith.constant 1.000000e+00 : f32
    %23 = vector.broadcast %cst_9 : f32 to vector<4x96xf32>
    %24 = arith.addf %23, %22 : vector<4x96xf32>
    %cst_10 = arith.constant 1.000000e+00 : f32
    %25 = vector.broadcast %cst_10 : f32 to vector<4x96xf32>
    %26 = arith.subf %25, %1 : vector<4x96xf32>
    %27 = arith.mulf %26, %0 : vector<4x96xf32>
    %28 = arith.mulf %24, %19 : vector<4x96xf32>
    %29 = arith.addf %27, %28 : vector<4x96xf32>
    %cst_11 = arith.constant 0.000000e+00 : f32
    %30 = vector.broadcast %cst_11 : f32 to vector<4x96xf32>
    %31 = arith.select %9, %29, %30 : vector<4x96xi1>, vector<4x96xf32>
    %32 = vector.shape_cast %31 : vector<4x96xf32> to vector<1x4x96xf32>
    %cst_12 = arith.constant dense<0.000000e+00> : vector<1xf32>
    %33 = vector.multi_reduction <add>, %32, %cst_12 [1, 2] : vector<1x4x96xf32> to vector<1xf32>
    %34 = vector.shape_cast %33 : vector<1xf32> to vector<1x1x1xf32>
    %35 = vector.extract %34[0, 0, 0] : f32 from vector<1x1x1xf32>
    %c0_13 = arith.constant 0 : index
    %c0_14 = arith.constant 0 : index
    %36 = memref.load %arg5[%c0_13, %c0_14] : memref<1x1xf32, #tpu.memory_space<smem>>
    memref.store %35, %arg5[%c0_13, %c0_14] : memref<1x1xf32, #tpu.memory_space<smem>>
    return
  }
  func.func @transform_0(%arg0: i32, %arg1: i32) -> (i32, i32) {
    %c0_i32 = arith.constant 0 : i32
    return %arg0, %arg1 : i32, i32
  }
  func.func @transform_1(%arg0: i32, %arg1: i32) -> (i32, i32) {
    %c0_i32 = arith.constant 0 : i32
    return %arg0, %arg1 : i32, i32
  }
  func.func @transform_2(%arg0: i32, %arg1: i32) -> (i32, i32) {
    %c0_i32 = arith.constant 0 : i32
    %c0_i32_0 = arith.constant 0 : i32
    return %arg0, %c0_i32 : i32, i32
  }
  func.func @transform_3(%arg0: i32, %arg1: i32) -> (i32, i32) {
    %c0_i32 = arith.constant 0 : i32
    return %arg0, %arg1 : i32, i32
  }
}

</mosaic_0001>

<llo_original>
// kernel: tpu_custom_call.1
$region0: #{tpu_custom_call.1}
  #allocation0 [shape = 'u32[]', space=smem, size = 0x4, offset = 0x4, fixed_abs, tag = 'smem constant byte address 0x4 - core index']
  #allocation1 [shape = 'u32[144,128]{1,0:T(1,128)}', space=vmem, size = 0x12000, scoped, tag = 'internal scratch']
  %s0 = inlined_call_operand.vmem [shape: f32[4,96], index: 0, kind: input, shape index: {}]
  %s1 = inlined_call_operand.vmem [shape: f32[4,96], index: 1, kind: input, shape index: {}]
  %s2 = inlined_call_operand.vmem [shape: s32[4,1], index: 2, kind: input, shape index: {}]
  %s3 = inlined_call_operand.hbm [shape: f32[1,1], index: 3, kind: output, shape index: {}]
  %s4 = sld [smem:[#allocation0]]
  $region22: #{tpu_custom_call.1} parent=0
    _
  %s6 = ssub.s32 1, %s4
  %s7 = scalar_select 0, %s6, %s4
  $region1: #{tpu_custom_call.1} parent=0
    #allocation2 [shape = 'u8[512]{0}', space=smem, size = 0x200, scoped, tag = 'output window, operand 0, single buffered']
    #allocation3 [shape = 's32[1]{0}', space=sflag, size = 0x4, scoped, tag = 'scoped memory for tpu_custom_call.1']
    %8 = vsyncpa [#allocation3], 0
    // Predicated region
    $region2: #{tpu_custom_call.1} parent=1 // pred_check
      _
    $region3: #{tpu_custom_call.1} parent=1 // pred_check_branch
      %10 = sbr.rel (0) target = $region5
    $region4: #{tpu_custom_call.1} parent=1 // pred_region
      _
    $region5: #{tpu_custom_call.1} parent=1 // pred_fallthru
      _
    // Predicated region
    $region6: #{tpu_custom_call.1} parent=1 // pred_check
      _
    $region7: #{tpu_custom_call.1} parent=1 // pred_check_branch
      %12 = sbr.rel (0) target = $region9
    $region8: #{tpu_custom_call.1} parent=1 // pred_region
      _
    $region9: #{tpu_custom_call.1} parent=1 // pred_fallthru
      _
    // Predicated region
    $region10: #{tpu_custom_call.1} parent=1 // pred_check
      _
    $region11: #{tpu_custom_call.1} parent=1 // pred_check_branch
      %14 = sbr.rel (0) target = $region13
    $region12: #{tpu_custom_call.1} parent=1 // pred_region
      _
    $region13: #{tpu_custom_call.1} parent=1 // pred_fallthru
      _
    %v15 = vld [vmem:[%s0] sm:$0xf]
    %v16 = vld [vmem:[%s1] sm:$0xf]
    %v17 = vld [vmem:[%s2] sm:$0xf]
    %v18 = vlaneseq
    %v19 = vand.u32 %v18, 127
    %s20 = smul.u32 0, 96
    %v21 = vstv %s20
    %v22 = vadd.s32 %v19, %v21
    %23 = vset.pattern.permute.xlu0 0
    %24 = vperm.xlu0 %23, %v17
    %v25 = vpop.permute.xlu0 %24
    %vm26 = vcmp.lt.s32.totalorder %v22, %v25
    %v27 = vsub.f32 0.0, %v15
    %v28 = vmax.f32 %v27, 0.0
    %v29 = vand.u32 2147483647, %v15
    %v30 = vsub.f32 0.0, %v29
    %v31 = vmul.f32 %v30, 1.442695
    %v32 = vpow.pop %v31
    %v33 = vadd.f32 %v32, 1.0
    %v34 = vlog2.pop %v33
    %v35 = vmul.f32 %v34, 0.6931472
    %v36 = vmul.f32 -0.5, %v32
    %v37 = vadd.f32 %v36, 1.0
    %v38 = vmul.f32 %v37, %v32
    %v39 = vand.u32 2147483647, %v32
    %vm40 = vcmp.lt.f32.partialorder %v39, 0.0004427343
    %v41 = vsel %vm40, %v38, %v35
    %v42 = vadd.f32 %v28, %v41
    %v43 = vmul.f32 %v16, 4.0
    %v44 = vadd.f32 %v43, 1.0
    %v45 = vsub.f32 1.0, %v16
    %v46 = vmul.f32 %v45, %v15
    %v47 = vmul.f32 %v44, %v42
    %v48 = vadd.f32 %v46, %v47
    %v49 = vsel %vm26, %v48, 0.0
    %vm50 = vcmask 781312
    %v51 = vsel %vm50, %v49, 0.0
    %52 = vadd.xlane.f32.xlu0 %v51
    %v53 = vpop.xlane.xlu0 %52
    %v54 = vrot.slane %v53, 4
    %v55 = vadd.f32 %v53, %v54
    %v56 = vrot.slane %v55, 2
    %v57 = vadd.f32 %v55, %v56
    %v58 = vrot.slane %v57, 1
    %v59 = vadd.f32 %v57, %v58
    %s60 = vtos %v59
    %s61 = scalar_lea.smem [#allocation2], 0
    %62 = sst [smem:[%s61]] %s60
    // Predicated region
    $region14: #{tpu_custom_call.1} parent=1 // pred_check
      _
    $region15: #{tpu_custom_call.1} parent=1 // pred_check_branch
      %64 = sbr.rel (0) target = $region17
    $region16: #{tpu_custom_call.1} parent=1 // pred_region
      %s66 = ssub.s32 16, 16
      %67 = vsyncadd [#allocation3], %s66
      %70 = dma.smem_to_hbm [#allocation2], 16, %s3, [#allocation3]
    $region17: #{tpu_custom_call.1} parent=1 // pred_fallthru
      _
    // Predicated region
    $region18: #{tpu_custom_call.1} parent=1 // pred_check
      _
    $region19: #{tpu_custom_call.1} parent=1 // pred_check_branch
      %72 = sbr.rel (0) target = $region21
    $region20: #{tpu_custom_call.1} parent=1 // pred_region
      %73 = dma.done [#allocation3], 16
    $region21: #{tpu_custom_call.1} parent=1 // pred_fallthru
      _
    %74 = sfence
    %75 = vsyncpa [#allocation3], 1

</llo_original>
